<compile_context>
chip_gen: v7x
topology: tpu7x:2x2x1
jax: 0.10.0
libtpu: 0.0.40
codegen_flags: <defaults>
</compile_context>

<pallas_src>
import jax
import jax.numpy as jnp
from jax.experimental import pallas as pl
from jax.experimental.pallas import tpu as pltpu
from functools import partial


def _round_up(n, m):
    return ((n + m - 1) // m) * m


# --------------------------------------------------------------------------- #
# Kernel body
# --------------------------------------------------------------------------- #
def _rbf_kernel(x_ref, pTm2_ref, xsq_ref, psq_ref, o_ref, *, neg_inv_two_sigma_sq):
    """One (tb, tp) output tile, accumulated over the feature (K) grid axis.

    x_ref:    (tb, tk)  input tile (matmul dtype; fed straight to the MXU)
    pTm2_ref: (tk, tp)  prototypes pre-transposed to [F, P] and pre-scaled by -2
    xsq_ref:  (tb, 1)   precomputed ||x||^2 column (f32)
    psq_ref:  (1,  tp)  precomputed ||p||^2 row (f32)
    o_ref:    (tb, tp)  f32 output block; doubles as the accumulator (resident
                        across the reduction axis because its index_map ignores k)
    """
    k = pl.program_id(2)

    @pl.when(k == 0)
    def _():
        # Initialize with the two norm terms; the loop only adds -2 x.p.
        o_ref[...] = xsq_ref[...] + psq_ref[...]

    # Pure MXU matmul-accumulate in the input dtype, f32 accumulation.
    o_ref[...] += jnp.dot(x_ref[...], pTm2_ref[...],
                          preferred_element_type=jnp.float32)

    @pl.when(k == pl.num_programs(2) - 1)
    def _():
        d = jnp.sqrt(jnp.maximum(o_ref[...], 0.0))          # Euclidean norm
        # multiply by the compile-time constant -1/(2*sigma^2) instead of dividing
        o_ref[...] = jnp.exp(d * neg_inv_two_sigma_sq)


# --------------------------------------------------------------------------- #
# Tiling / preprocessing helpers
# --------------------------------------------------------------------------- #
def _choose_tiles(B, F, P, tb_max, tp_max, tk_max):
    # Batch tile: multiple of 8 sublanes (or the full dim when B < 8).
    tb = B if B < 8 else min(tb_max, _round_up(B, 8))
    # Prototype (lane) tile: multiple of 128 lanes (or the full dim when P < 128).
    tp = P if P < 128 else min(tp_max, _round_up(P, 128))
    # Feature (reduction) tile: F is zero-padded up to a multiple of tk, which is
    # required for correctness (garbage in padded K features would corrupt output).
    tk = min(tk_max, _round_up(F, 128))
    F_pad = _round_up(F, tk)
    # v7x megacore: keep >= 2 "parallel" output blocks so both TensorCores work.
    if pl.cdiv(B, tb) * pl.cdiv(P, tp) == 1 and B >= 16:
        tb = _round_up(pl.cdiv(B, 2), 8)
    return tb, tp, tk, F_pad


def _prepare_prototypes(prototypes, F_pad, matmul_dtype=None):
    """Weight-side preprocessing (do once per parameter set, not per forward)."""
    P, F = prototypes.shape
    proto_f32 = prototypes.astype(jnp.float32)
    p_sq = jnp.sum(proto_f32 * proto_f32, axis=-1)[None, :]          # (1, P) f32
    proto_p = prototypes
    if F_pad != F:
        proto_p = jnp.pad(proto_p, ((0, 0), (0, F_pad - F)))         # zeros -> exact
    # Pre-scale by -2 (exact: power-of-two scaling) and transpose to [F_pad, P].
    pT_m2 = (proto_p * jnp.asarray(-2.0, proto_p.dtype)).T
    if matmul_dtype is not None:
        pT_m2 = pT_m2.astype(matmul_dtype)
    return pT_m2, p_sq


# --------------------------------------------------------------------------- #
# Pallas forward
# --------------------------------------------------------------------------- #
def _rbf_forward(x, pT_m2, p_sq, sigma, *, tb, tp, tk, matmul_dtype=None,
                 interpret=False):
    B, F = x.shape
    F_pad, P = pT_m2.shape

    # ||x||^2 computed once per call in f32 (cancellation safety), (B, 1).
    x_f32 = x.astype(jnp.float32)
    x_sq = jnp.sum(x_f32 * x_f32, axis=-1, keepdims=True)

    # Only the reduction axis needs padding; B / P use overhanging edge blocks.
    x_p = x if F_pad == F else jnp.pad(x, ((0, 0), (0, F_pad - F)))
    if matmul_dtype is not None:
        x_p = x_p.astype(matmul_dtype)

    grid = (pl.cdiv(B, tb), pl.cdiv(P, tp), F_pad // tk)

    # VMEM budget: double-buffered inputs + resident f32 output block.
    footprint = 2 * (tb * tk * x_p.dtype.itemsize
                     + tk * tp * pT_m2.dtype.itemsize
                     + tb * tp * 4
                     + (tb + tp) * 4)
    vmem_limit = int(min(48 * 2**20, max(32 * 2**20, int(footprint * 1.5))))

    # NOTE: sigma is a fixed hyper-parameter of the module (not learned); it is
    # baked in as a compile-time constant.  Do not pass a traced value here.
    neg_inv_two_sigma_sq = -1.0 / (2.0 * float(sigma) ** 2)

    return pl.pallas_call(
        partial(_rbf_kernel, neg_inv_two_sigma_sq=neg_inv_two_sigma_sq),
        out_shape=jax.ShapeDtypeStruct((B, P), jnp.float32),
        grid_spec=pltpu.PrefetchScalarGridSpec(
            num_scalar_prefetch=0,
            grid=grid,
            in_specs=[
                pl.BlockSpec((tb, tk), lambda i, j, k: (i, k)),   # x tile
                pl.BlockSpec((tk, tp), lambda i, j, k: (k, j)),   # (-2 * prototypes)^T
                pl.BlockSpec((tb, 1), lambda i, j, k: (i, 0)),    # ||x||^2 column
                pl.BlockSpec((1, tp), lambda i, j, k: (0, j)),    # ||p||^2 row
            ],
            out_specs=pl.BlockSpec((tb, tp), lambda i, j, k: (i, j)),
        ),
        compiler_params=pltpu.CompilerParams(
            dimension_semantics=("parallel", "parallel", "arbitrary"),
            vmem_limit_bytes=vmem_limit,
        ),
        interpret=interpret,
    )(x_p, pT_m2, x_sq, p_sq)


def kernel_layer_forward(x, prototypes, sigma, *, tb_max=512, tp_max=512,
                         tk_max=1024, matmul_dtype=None, force_pallas=False,
                         interpret=False):
    """One-shot wrapper: x [B, F], prototypes [P, F] -> [B, P] float32."""
    assert x.shape[1] == prototypes.shape[1]
    B, F = x.shape
    P = prototypes.shape[0]

    # Small-shape fast path: pallas_call fixed overhead + feature padding dominate
    # at the module's own sizes; the fused XLA expression is faster there.
    if (not force_pallas) and (B * P * F < (1 << 20)):
        return kernel_layer_reference(x, prototypes, sigma)

    tb, tp, tk, F_pad = _choose_tiles(B, F, P, tb_max, tp_max, tk_max)
    pT_m2, p_sq = _prepare_prototypes(prototypes, F_pad, matmul_dtype)
    return _rbf_forward(x, pT_m2, p_sq, sigma, tb=tb, tp=tp, tk=tk,
                        matmul_dtype=matmul_dtype, interpret=interpret)


def make_kernel_layer(prototypes, sigma, *, tb_max=512, tp_max=512, tk_max=1024,
                      matmul_dtype=None):
    """Hoists the weight-side preprocessing (pad / transpose / -2 scale / ||p||^2)
    to parameter-init time; returns forward(x) -> [B, P]."""
    P, F = prototypes.shape
    tk = min(tk_max, _round_up(F, 128))
    F_pad = _round_up(F, tk)
    pT_m2, p_sq = _prepare_prototypes(prototypes, F_pad, matmul_dtype)

    def forward(x, *, force_pallas=True):
        assert x.shape[1] == F
        B = x.shape[0]
        if (not force_pallas) and (B * P * F < (1 << 20)):
            return kernel_layer_reference(x, prototypes, sigma)
        tb, tp, _, _ = _choose_tiles(B, F, P, tb_max, tp_max, tk_max)
        return _rbf_forward(x, pT_m2, p_sq, sigma, tb=tb, tp=tp, tk=tk,
                            matmul_dtype=matmul_dtype)

    return forward


# --------------------------------------------------------------------------- #
# Pure-JAX reference (mirrors the PyTorch forward exactly)
# --------------------------------------------------------------------------- #
def kernel_layer_reference(x, prototypes, sigma):
    diff = x[:, None, :].astype(jnp.float32) - prototypes[None, :, :].astype(jnp.float32)
    two_norm_squared = jnp.sqrt(jnp.sum(diff ** 2, axis=-1))
    return jnp.exp(-two_norm_squared / (2.0 * float(sigma) ** 2))


if __name__ == "__main__":
    key = jax.random.PRNGKey(0)
    k1, k2, k3, k4 = jax.random.split(key, 4)
    sigma = 1.5

    # --- test 1: small shapes consistent with the module (forced Pallas path) --
    B, F, P = 8, 32, 16
    x = jax.random.normal(k1, (B, F), dtype=jnp.float32)
    prototypes = jax.random.normal(k2, (P, F), dtype=jnp.float32)

    out = kernel_layer_forward(x, prototypes, sigma, force_pallas=True)
    out = jax.block_until_ready(out)
    ref = kernel_layer_reference(x, prototypes, sigma)
    assert out.shape == (B, P)
    assert jnp.allclose(out, ref, atol=1e-4, rtol=1e-4), "mismatch vs reference (small)"

    # --- test 2: awkward sizes exercising multi-tile grid + edge blocks --------
    B2, F2, P2 = 96, 200, 300
    x2 = jax.random.normal(k3, (B2, F2), dtype=jnp.float32)
    prototypes2 = jax.random.normal(k4, (P2, F2), dtype=jnp.float32)

    layer = make_kernel_layer(prototypes2, sigma, tb_max=64, tp_max=128, tk_max=128)
    out2 = jax.block_until_ready(layer(x2))
    ref2 = kernel_layer_reference(x2, prototypes2, sigma)
    assert out2.shape == (B2, P2)
    assert jnp.allclose(out2, ref2, atol=1e-4, rtol=1e-4), "mismatch vs reference (tiled)"

    print("KERNEL_OK")
</pallas_src>

<mosaic_0001>
module attributes {stable_mosaic.version = 11 : i64} {
  func.func @_rbf_kernel(%arg0: i32, %arg1: i32, %arg2: i32, %arg3: memref<8x128xf32, #tpu.memory_space<vmem>>, %arg4: memref<128x16xf32, #tpu.memory_space<vmem>>, %arg5: memref<8x1xf32, #tpu.memory_space<vmem>>, %arg6: memref<1x16xf32, #tpu.memory_space<vmem>>, %arg7: memref<8x16xf32, #tpu.memory_space<vmem>>) attributes {dimension_semantics = [#tpu.dimension_semantics<parallel>, #tpu.dimension_semantics<parallel>, #tpu.dimension_semantics<arbitrary>], iteration_bounds = array<i64: 1, 1, 1>, scalar_prefetch = 0 : i64, scratch_operands = 0 : i64, tpu.core_type = #tpu.core_type<tc>, window_params = [{transform_indices = @transform_0, window_bounds = array<i64: 8, 128>}, {transform_indices = @transform_1, window_bounds = array<i64: 128, 16>}, {transform_indices = @transform_2, window_bounds = array<i64: 8, 1>}, {transform_indices = @transform_3, window_bounds = array<i64: 1, 16>}, {transform_indices = @transform_4, window_bounds = array<i64: 8, 16>}]} {
    %c0_i32 = arith.constant 0 : i32
    %0 = arith.cmpi eq, %arg2, %c0_i32 : i32
    %1 = arith.extui %0 : i1 to i32
    %c0_i32_0 = arith.constant 0 : i32
    %2 = arith.cmpi ne, %1, %c0_i32_0 : i32
    scf.if %2 {
      %c0_10 = arith.constant 0 : index
      %c0_11 = arith.constant 0 : index
      %12 = vector.load %arg5[%c0_10, %c0_11] : memref<8x1xf32, #tpu.memory_space<vmem>>, vector<8x1xf32>
      %c0_12 = arith.constant 0 : index
      %c0_13 = arith.constant 0 : index
      %13 = vector.load %arg6[%c0_12, %c0_13] : memref<1x16xf32, #tpu.memory_space<vmem>>, vector<1x16xf32>
      %14 = vector.broadcast %12 : vector<8x1xf32> to vector<8x16xf32>
      %15 = vector.broadcast %13 : vector<1x16xf32> to vector<8x16xf32>
      %16 = arith.addf %14, %15 : vector<8x16xf32>
      %c0_14 = arith.constant 0 : index
      %c0_15 = arith.constant 0 : index
      %17 = vector.load %arg7[%c0_14, %c0_15] : memref<8x16xf32, #tpu.memory_space<vmem>>, vector<8x16xf32>
      tpu.vector_store %arg7[%c0_14, %c0_15], %16 {strides = array<i32>} : memref<8x16xf32, #tpu.memory_space<vmem>>, vector<8x16xf32>,
    } else {
    }
    %c0 = arith.constant 0 : index
    %c0_1 = arith.constant 0 : index
    %3 = vector.load %arg7[%c0, %c0_1] : memref<8x16xf32, #tpu.memory_space<vmem>>, vector<8x16xf32>
    %c0_2 = arith.constant 0 : index
    %c0_3 = arith.constant 0 : index
    %4 = vector.load %arg3[%c0_2, %c0_3] : memref<8x128xf32, #tpu.memory_space<vmem>>, vector<8x128xf32>
    %c0_4 = arith.constant 0 : index
    %c0_5 = arith.constant 0 : index
    %5 = vector.load %arg4[%c0_4, %c0_5] : memref<128x16xf32, #tpu.memory_space<vmem>>, vector<128x16xf32>
    %cst = arith.constant dense<0.000000e+00> : vector<8x16xf32>
    %6 = tpu.matmul %4, %5, %cst {dimension_numbers = #tpu.dot_dimension_numbers<[1], [0], [0], [1], [0, 0, 1, 1], [], []>} : vector<8x128xf32>, vector<128x16xf32>, vector<8x16xf32> -> vector<8x16xf32>
    %7 = arith.addf %3, %6 : vector<8x16xf32>
    %c0_6 = arith.constant 0 : index
    %c0_7 = arith.constant 0 : index
    %8 = vector.load %arg7[%c0_6, %c0_7] : memref<8x16xf32, #tpu.memory_space<vmem>>, vector<8x16xf32>
    tpu.vector_store %arg7[%c0_6, %c0_7], %7 {strides = array<i32>} : memref<8x16xf32, #tpu.memory_space<vmem>>, vector<8x16xf32>,
    %c0_i32_8 = arith.constant 0 : i32
    %9 = arith.cmpi eq, %arg2, %c0_i32_8 : i32
    %10 = arith.extui %9 : i1 to i32
    %c0_i32_9 = arith.constant 0 : i32
    %11 = arith.cmpi ne, %10, %c0_i32_9 : i32
    scf.if %11 {
      %c0_10 = arith.constant 0 : index
      %c0_11 = arith.constant 0 : index
      %12 = vector.load %arg7[%c0_10, %c0_11] : memref<8x16xf32, #tpu.memory_space<vmem>>, vector<8x16xf32>
      %cst_12 = arith.constant 0.000000e+00 : f32
      %13 = vector.broadcast %cst_12 : f32 to vector<8x16xf32>
      %14 = arith.maximumf %12, %13 : vector<8x16xf32>
      %15 = math.sqrt %14 : vector<8x16xf32>
      %cst_13 = arith.constant -0.222222224 : f32
      %16 = vector.broadcast %cst_13 : f32 to vector<8x16xf32>
      %17 = arith.mulf %15, %16 : vector<8x16xf32>
      %18 = math.exp %17 : vector<8x16xf32>
      %c0_14 = arith.constant 0 : index
      %c0_15 = arith.constant 0 : index
      %19 = vector.load %arg7[%c0_14, %c0_15] : memref<8x16xf32, #tpu.memory_space<vmem>>, vector<8x16xf32>
      tpu.vector_store %arg7[%c0_14, %c0_15], %18 {strides = array<i32>} : memref<8x16xf32, #tpu.memory_space<vmem>>, vector<8x16xf32>,
    } else {
    }
    return
  }
  func.func @transform_0(%arg0: i32, %arg1: i32, %arg2: i32) -> (i32, i32) {
    %c0_i32 = arith.constant 0 : i32
    return %arg0, %arg2 : i32, i32
  }
  func.func @transform_1(%arg0: i32, %arg1: i32, %arg2: i32) -> (i32, i32) {
    %c0_i32 = arith.constant 0 : i32
    return %arg2, %arg1 : i32, i32
  }
  func.func @transform_2(%arg0: i32, %arg1: i32, %arg2: i32) -> (i32, i32) {
    %c0_i32 = arith.constant 0 : i32
    %c0_i32_0 = arith.constant 0 : i32
    return %arg0, %c0_i32 : i32, i32
  }
  func.func @transform_3(%arg0: i32, %arg1: i32, %arg2: i32) -> (i32, i32) {
    %c0_i32 = arith.constant 0 : i32
    %c0_i32_0 = arith.constant 0 : i32
    return %c0_i32, %arg1 : i32, i32
  }
  func.func @transform_4(%arg0: i32, %arg1: i32, %arg2: i32) -> (i32, i32) {
    %c0_i32 = arith.constant 0 : i32
    return %arg0, %arg1 : i32, i32
  }
}

</mosaic_0001>

<llo_original>
// kernel: tpu_custom_call.1
$region0: #{tpu_custom_call.1}
  #allocation0 [shape = 'u32[]', space=smem, size = 0x4, offset = 0x4, fixed_abs, tag = 'smem constant byte address 0x4 - core index']
  #allocation1 [shape = 'u32[144,128]{1,0:T(1,128)}', space=vmem, size = 0x12000, scoped, tag = 'internal scratch']
  %s0 = inlined_call_operand.vmem [shape: f32[8,128], index: 0, kind: input, shape index: {}]
  %s1 = inlined_call_operand.vmem [shape: f32[128,16], index: 1, kind: input, shape index: {}]
  %s2 = inlined_call_operand.vmem [shape: f32[8,1], index: 2, kind: input, shape index: {}]
  %s3 = inlined_call_operand.vmem [shape: f32[1,16], index: 3, kind: input, shape index: {}]
  %s4 = inlined_call_operand.hbm [shape: f32[8,16], index: 4, kind: output, shape index: {}]
  %s5 = sld [smem:[#allocation0]]
  $region34: #{tpu_custom_call.1} parent=0
    _
  %s7 = ssub.s32 1, %s5
  %s8 = scalar_select 0, %s7, %s5
  $region1: #{tpu_custom_call.1} parent=0
    #allocation2 [shape = 'u8[4096]{0}', space=vmem, size = 0x1000, scoped, tag = 'output window, operand 0, single buffered']
    #allocation3 [shape = 's32[1]{0}', space=sflag, size = 0x4, scoped, tag = 'scoped memory for tpu_custom_call.1']
    %9 = vsyncpa [#allocation3], 0
    // Predicated region
    $region2: #{tpu_custom_call.1} parent=1 // pred_check
      _
    $region3: #{tpu_custom_call.1} parent=1 // pred_check_branch
      %11 = sbr.rel (0) target = $region5
    $region4: #{tpu_custom_call.1} parent=1 // pred_region
      _
    $region5: #{tpu_custom_call.1} parent=1 // pred_fallthru
      _
    // Predicated region
    $region6: #{tpu_custom_call.1} parent=1 // pred_check
      _
    $region7: #{tpu_custom_call.1} parent=1 // pred_check_branch
      %13 = sbr.rel (0) target = $region9
    $region8: #{tpu_custom_call.1} parent=1 // pred_region
      _
    $region9: #{tpu_custom_call.1} parent=1 // pred_fallthru
      _
    // Predicated region
    $region10: #{tpu_custom_call.1} parent=1 // pred_check
      _
    $region11: #{tpu_custom_call.1} parent=1 // pred_check_branch
      %15 = sbr.rel (0) target = $region13
    $region12: #{tpu_custom_call.1} parent=1 // pred_region
      _
    $region13: #{tpu_custom_call.1} parent=1 // pred_fallthru
      _
    // Predicated region
    $region14: #{tpu_custom_call.1} parent=1 // pred_check
      _
    $region15: #{tpu_custom_call.1} parent=1 // pred_check_branch
      %17 = sbr.rel (0) target = $region17
    $region16: #{tpu_custom_call.1} parent=1 // pred_region
      _
    $region17: #{tpu_custom_call.1} parent=1 // pred_fallthru
      _
    %p18 = scmp.eq.s32.totalorder 0, 0
    // Predicated region
    $region18: #{tpu_custom_call.1} parent=1 // pred_check
      %p19 = pneg %p18
    $region19: #{tpu_custom_call.1} parent=1 // pred_check_branch
      %21 = sbr.rel (%p19) target = $region21
    $region20: #{tpu_custom_call.1} parent=1 // pred_region
      %v22 = vld [vmem:[%s2] sm:$0xff]
      %v23 = vld [vmem:[%s3] sm:$0x1]
      %25 = vset.pattern.permute.xlu0 0
      %26 = vperm.xlu0 %25, %v22
      %v27 = vpop.permute.xlu0 %26
      %v30 = vlaneseq
      %v31 = vshrl.u32 %v30, 7
      %v32 = vsub.s32 0, %v31
      %v33 = vrot.slane %v23, %v32
      %v35 = vadd.f32 %v27, %v33
      %vm36 = vcmask 130048
      %37 = vst.msk [vmem:[#allocation2] sm:$0xff] %vm36, %v35
    $region21: #{tpu_custom_call.1} parent=1 // pred_fallthru
      _
    %v38 = vld [vmem:[#allocation2] sm:$0xff]
    %v39 = vld [vmem:[%s0] sm:$0xff]
    %v40 = vld [vmem:[%s1] sm:$0xff]
    %v41 = vld [vmem:[%s1 + $0x8] sm:$0xff]
    %v42 = vld [vmem:[%s1 + $0x10] sm:$0xff]
    %v43 = vld [vmem:[%s1 + $0x18] sm:$0xff]
    %v44 = vld [vmem:[%s1 + $0x20] sm:$0xff]
    %v45 = vld [vmem:[%s1 + $0x28] sm:$0xff]
    %v46 = vld [vmem:[%s1 + $0x30] sm:$0xff]
    %v47 = vld [vmem:[%s1 + $0x38] sm:$0xff]
    %v48 = vld [vmem:[%s1 + $0x40] sm:$0xff]
    %v49 = vld [vmem:[%s1 + $0x48] sm:$0xff]
    %v50 = vld [vmem:[%s1 + $0x50] sm:$0xff]
    %v51 = vld [vmem:[%s1 + $0x58] sm:$0xff]
    %v52 = vld [vmem:[%s1 + $0x60] sm:$0xff]
    %v53 = vld [vmem:[%s1 + $0x68] sm:$0xff]
    %v54 = vld [vmem:[%s1 + $0x70] sm:$0xff]
    %v55 = vld [vmem:[%s1 + $0x78] sm:$0xff]
    %56 = vmatprep.subr.mxu0 0.0
    %57 = vmatpush1.msra.mxu0 %v40
    %58 = vmatprep.subr.mxu0 0.0
    %59 = vmatpush1.msra.mxu0 %v41
    %60 = vmatprep.subr.mxu0 0.0
    %61 = vmatpush1.msra.mxu0 %v42
    %62 = vmatprep.subr.mxu0 0.0
    %63 = vmatpush1.msra.mxu0 %v43
    %64 = vmatprep.subr.mxu0 0.0
    %65 = vmatpush1.msra.mxu0 %v44
    %66 = vmatprep.subr.mxu0 0.0
    %67 = vmatpush1.msra.mxu0 %v45
    %68 = vmatprep.subr.mxu0 0.0
    %69 = vmatpush1.msra.mxu0 %v46
    %70 = vmatprep.subr.mxu0 0.0
    %71 = vmatpush1.msra.mxu0 %v47
    %72 = vmatprep.subr.mxu0 0.0
    %73 = vmatpush1.msra.mxu0 %v48
    %74 = vmatprep.subr.mxu0 0.0
    %75 = vmatpush1.msra.mxu0 %v49
    %76 = vmatprep.subr.mxu0 0.0
    %77 = vmatpush1.msra.mxu0 %v50
    %78 = vmatprep.subr.mxu0 0.0
    %79 = vmatpush1.msra.mxu0 %v51
    %80 = vmatprep.subr.mxu0 0.0
    %81 = vmatpush1.msra.mxu0 %v52
    %82 = vmatprep.subr.mxu0 0.0
    %83 = vmatpush1.msra.mxu0 %v53
    %84 = vmatprep.subr.mxu0 0.0
    %85 = vmatpush1.msra.mxu0 %v54
    %86 = vmatprep.subr.mxu0 0.0
    %87 = vmatpush1.msra.mxu0 %v55
    %88 = vmatprep.subr.mxu0 0.0
    %89 = vmatpush1.msra.mxu0 0.0
    %90 = vmatprep.subr.mxu0 0.0
    %91 = vmatpush1.msra.mxu0 0.0
    %92 = vmatprep.subr.mxu0 0.0
    %93 = vmatpush1.msra.mxu0 0.0
    %94 = vmatprep.subr.mxu0 0.0
    %95 = vmatpush1.msra.mxu0 0.0
    %96 = vmatprep.subr.mxu0 0.0
    %97 = vmatpush1.msra.mxu0 0.0
    %98 = vmatprep.subr.mxu0 0.0
    %99 = vmatpush1.msra.mxu0 0.0
    %100 = vmatprep.subr.mxu0 0.0
    %101 = vmatpush1.msra.mxu0 0.0
    %102 = vmatprep.subr.mxu0 0.0
    %103 = vmatpush1.msra.mxu0 0.0
    %104 = vmatprep.subr.mxu0 0.0
    %105 = vmatpush1.msra.mxu0 0.0
    %106 = vmatprep.subr.mxu0 0.0
    %107 = vmatpush1.msra.mxu0 0.0
    %108 = vmatprep.subr.mxu0 0.0
    %109 = vmatpush1.msra.mxu0 0.0
    %110 = vmatprep.subr.mxu0 0.0
    %111 = vmatpush1.msra.mxu0 0.0
    %112 = vmatprep.subr.mxu0 0.0
    %113 = vmatpush1.msra.mxu0 0.0
    %114 = vmatprep.subr.mxu0 0.0
    %115 = vmatpush1.msra.mxu0 0.0
    %116 = vmatprep.subr.mxu0 0.0
    %117 = vmatpush1.msra.mxu0 0.0
    %118 = vmatprep.subr.mxu0 0.0
    %119 = vmatpush1.msra.mxu0 0.0
    %120 = vmatprep.mubr.f32.mxu0 0.0
    %121 = vmatmul.mubr.f32.gmra.mrb[0].mxu0 %v39
    %v122 = vpop.f32.mrb[0].mxu0
    %v123 = vadd.f32 0.0, %v122
    %v124 = vpop.f32.mrb[0].mxu0
    %125 = vdwg.mxu0
    %v126 = vadd.f32 %v38, %v123
    %vm127 = vcmask 130048
    %128 = vst.msk [vmem:[#allocation2] sm:$0xff] %vm127, %v126
    // Predicated region
    $region22: #{tpu_custom_call.1} parent=1 // pred_check
      %p129 = pneg %p18
    $region23: #{tpu_custom_call.1} parent=1 // pred_check_branch
      %131 = sbr.rel (%p129) target = $region25
    $region24: #{tpu_custom_call.1} parent=1 // pred_region
      %v132 = vld [vmem:[#allocation2] sm:$0xff]
      %v133 = vmax.f32 %v132, 0.0
      %v134 = vrsqrt.pop %v133
      %v135 = vmul.f32 %v133, %v134
      %vm136 = vcmp.eq.f32.partialorder %v133, inf
      %v137 = vsel %vm136, %v133, %v135
      %vm138 = vcmp.eq.f32.partialorder %v133, 0.0
      %v139 = vand.u32 %v133, 2147483648
      %v140 = vsel %vm138, %v139, %v137
      %v141 = vmul.f32 %v140, -0.22222222
      %v142 = vmul.f32 %v141, 1.442695
      %v143 = vpow.pop %v142
      %144 = vst.msk [vmem:[#allocation2] sm:$0xff] %vm127, %v143
    $region25: #{tpu_custom_call.1} parent=1 // pred_fallthru
      _
    // Predicated region
    $region26: #{tpu_custom_call.1} parent=1 // pred_check
      _
    $region27: #{tpu_custom_call.1} parent=1 // pred_check_branch
      %146 = sbr.rel (0) target = $region29
    $region28: #{tpu_custom_call.1} parent=1 // pred_region
      %s148 = ssub.s32 128, 128
      %149 = vsyncadd [#allocation3], %s148
      %s151 = sshll.u32 [#allocation2], 4
      %s152 = int_to_ptr.vmem [resolvable:$true] %s151
      %154 = dma.vmem_to_hbm [thread:$0]  %s152, 128, %s4, [#allocation3]
    $region29: #{tpu_custom_call.1} parent=1 // pred_fallthru
      _
    // Predicated region
    $region30: #{tpu_custom_call.1} parent=1 // pred_check
      _
    $region31: #{tpu_custom_call.1} parent=1 // pred_check_branch
      %156 = sbr.rel (0) target = $region33
    $region32: #{tpu_custom_call.1} parent=1 // pred_region
      %157 = dma.done [#allocation3], 128
    $region33: #{tpu_custom_call.1} parent=1 // pred_fallthru
      _
    %158 = vsyncpa [#allocation3], 1

</llo_original>
